<compile_context>
chip_gen: v7x
topology: tpu7x:2x2x1
jax: 0.10.0
libtpu: 0.0.40
codegen_flags: <defaults>
</compile_context>

<pallas_src>
import functools

import numpy as np
import jax
import jax.numpy as jnp
from jax.experimental import pallas as pl
from jax.experimental.pallas import tpu as pltpu

INPUT_DIM = 18          # 6 colors x 3 channels
N_GROUPS = 6
N_SHADES = 9
N_CH = 3
HALF_DIM = N_GROUPS * N_SHADES * N_CH        # 162
OUT_DIM = 2 * HALF_DIM                       # 324  (light | dark)
N_CONST_ROWS = 6                             # bias | lo1 | hi1 | shift | lo2 | hi2

# Per-shade-row additive shifts, indexed by (i % 3, shade_row).
_SHIFT_LIGHT = np.array([
    [0.0, -0.04, -0.08,  0.02, -0.15, 0.0, -0.05, -0.10, -0.15],
    [0.0, -0.04, -0.08,  0.17, -0.02, 0.0, -0.05, -0.10, -0.15],
    [0.0, -0.05, -0.10,  0.12, -0.12, 0.0, -0.05, -0.10, -0.15],
], dtype=np.float32)
_SHIFT_DARK = np.array([
    [0.0,  0.04,  0.08, -0.04, -0.02, 0.0,  0.05,  0.10,  0.15],
    [0.0,  0.04,  0.08, -0.15, -0.05, 0.0,  0.05,  0.10,  0.15],
    [0.0,  0.07,  0.14, -0.12, -0.08, 0.0,  0.05,  0.10,  0.15],
], dtype=np.float32)


@functools.lru_cache(maxsize=None)
def _rule_constants():
    """Fold broadcast + accent selection + row-0 affine rules into constants.

    Output lane k encodes (theme, group i, shade row j, channel c):
        k = theme*162 + i*27 + j*3 + c
    pre  = x @ W + bias                       (row-0 affine rule, per lane)
    base = min(max(pre,  lo1), hi1)           (lo1/hi1 = [0,1] iff dark & i%3 in {0,2})
    out  = min(max(base + shift, lo2), hi2)   (lo2/hi2 = [0,1] iff shade row not in {0,5})
    """
    w = np.zeros((INPUT_DIM, OUT_DIM), np.float32)
    bias = np.zeros(OUT_DIM, np.float32)
    lo1 = np.full(OUT_DIM, -np.inf, np.float32)
    hi1 = np.full(OUT_DIM, np.inf, np.float32)
    shift = np.zeros(OUT_DIM, np.float32)
    lo2 = np.full(OUT_DIM, -np.inf, np.float32)
    hi2 = np.full(OUT_DIM, np.inf, np.float32)
    for half, is_dark in ((0, False), (1, True)):
        for i in range(N_GROUPS):
            m = i % 3
            accent = (i // 3) * 3 + 2
            for j in range(N_SHADES):
                for c in range(N_CH):
                    k = half * HALF_DIM + i * 27 + j * 3 + c
                    if not is_dark:
                        # light row 0 is the input color itself (unclamped)
                        w[i * 3 + c, k] += 1.0
                        shift[k] = _SHIFT_LIGHT[m, j]
                    else:
                        if m == 0:      # clamp(0.05 + 0.05*(1-x) + 0.05*accent, 0, 1)
                            w[i * 3 + c, k] += -0.05
                            w[accent * 3 + c, k] += 0.05
                            bias[k] = 0.10
                            lo1[k], hi1[k] = 0.0, 1.0
                        elif m == 1:    # 0.85 + 0.15*(1-x)   (no clamp in the module)
                            w[i * 3 + c, k] += -0.15
                            bias[k] = 1.0
                        else:           # clamp(1.2*x, 0, 1)
                            w[i * 3 + c, k] += 1.2
                            lo1[k], hi1[k] = 0.0, 1.0
                        shift[k] = _SHIFT_DARK[m, j]
                    if j not in (0, 5):
                        lo2[k], hi2[k] = 0.0, 1.0
                    else:
                        # min/max-bounds rewrite of the row clamp relies on this.
                        assert shift[k] == 0.0, "shift must be 0 where row-clamp is off"
    consts = np.stack([bias, lo1, hi1, shift, lo2, hi2], axis=0)  # (6, 324)
    return jnp.asarray(w), jnp.asarray(consts)


def _color_rules_kernel(x_ref, w_ref, const_ref, out_ref):
    """(bb,18) @ (18,324) f32 MXU matmul + per-lane min/max clamp tail."""
    pre = jnp.dot(x_ref[...], w_ref[...],
                  preferred_element_type=jnp.float32,
                  precision=jax.lax.Precision.HIGHEST)   # keep full f32 accuracy
    pre = pre + const_ref[0:1, :]                                     # + bias
    base = jnp.minimum(jnp.maximum(pre, const_ref[1:2, :]), const_ref[2:3, :])
    shifted = base + const_ref[3:4, :]
    out_ref[...] = jnp.minimum(jnp.maximum(shifted, const_ref[4:5, :]),
                               const_ref[5:6, :])


def color_preserving_generator_forward(x, *, block_b=4096):
    """Pallas forward of ColorPreservingGenerator: x (B, 18) f32 -> (B, 324) f32."""
    B = x.shape[0]
    assert x.shape == (B, INPUT_DIM)
    x = x.astype(jnp.float32)
    w, consts = _rule_constants()

    # Batch tile: must be a multiple of 8 (sublane rule) unless it equals B.
    # For batches that fit one tile we still aim for >=2 grid steps (when that
    # keeps tiles >= 8 rows) so dimension_semantics=("parallel",) can split the
    # grid across v7x's 2 TensorCores.  No pad / slice: grid = cdiv(B, bb) and
    # Pallas masks the ragged final block.
    if B <= block_b:
        if B <= 8:
            bb = B                                   # full-batch single block
        else:
            bb = max(8, ((pl.cdiv(B, 2) + 7) // 8) * 8)
            if pl.cdiv(B, bb) == 1:
                bb = B
    else:
        bb = block_b                                 # multiple of 8 by default
    grid = (pl.cdiv(B, bb),)

    out = pl.pallas_call(
        _color_rules_kernel,
        out_shape=jax.ShapeDtypeStruct((B, OUT_DIM), jnp.float32),
        grid=grid,
        in_specs=[
            pl.BlockSpec((bb, INPUT_DIM), lambda b: (b, 0)),           # x tile
            pl.BlockSpec((INPUT_DIM, OUT_DIM), lambda b: (0, 0)),      # W (resident)
            pl.BlockSpec((N_CONST_ROWS, OUT_DIM), lambda b: (0, 0)),   # stacked consts
        ],
        out_specs=pl.BlockSpec((bb, OUT_DIM), lambda b: (b, 0)),
        compiler_params=pltpu.CompilerParams(
            dimension_semantics=("parallel",),
            vmem_limit_bytes=32 * 1024 * 1024),
        cost_estimate=pl.CostEstimate(
            flops=2 * B * INPUT_DIM * OUT_DIM + 8 * B * OUT_DIM,
            transcendentals=0,
            bytes_accessed=4 * (B * INPUT_DIM + B * OUT_DIM
                                + INPUT_DIM * OUT_DIM + N_CONST_ROWS * OUT_DIM)),
    )(x, w, consts)
    return out


# ----------------------------------------------------------------------------
# Pure-JAX reference: the COMPLETE PyTorch forward (encoder + both branches +
# color rules).  Dropout = identity (eval mode); in train mode Dropout is
# stochastic but still cannot reach the output since the rules overwrite it.
# ----------------------------------------------------------------------------
def _leaky_relu(z):
    return jnp.where(z >= 0, z, 0.2 * z)


def _apply_color_rules_ref(output, x_reshaped, is_dark):
    result = output
    for i in range(6):
        if not is_dark:
            row0 = x_reshaped[:, i, :]
        elif i % 3 == 0:
            accent_index = i // 3 * 3 + 2
            accent_color = x_reshaped[:, accent_index, :]
            dark_base = 0.05 + 0.05 * (1.0 - x_reshaped[:, i, :])
            row0 = jnp.clip(dark_base + 0.05 * accent_color, 0.0, 1.0)
        elif i % 3 == 1:
            row0 = 0.85 + 0.15 * (1.0 - x_reshaped[:, i, :])
        else:
            row0 = jnp.clip(x_reshaped[:, i, :] * 1.2, 0.0, 1.0)
        result = result.at[:, i, 0, :].set(row0)
    for i in range(6):
        base = result[:, i, 0, :]
        if i % 3 == 0:
            deltas = (-0.04, -0.08, 0.02, -0.15) if not is_dark else (0.04, 0.08, -0.04, -0.02)
        elif i % 3 == 1:
            deltas = (-0.04, -0.08, 0.17, -0.02) if not is_dark else (0.04, 0.08, -0.15, -0.05)
        else:
            deltas = (-0.05, -0.10, 0.12, -0.12) if not is_dark else (0.07, 0.14, -0.12, -0.08)
        for j, d in zip(range(1, 5), deltas):
            result = result.at[:, i, j, :].set(jnp.clip(base + d, 0.0, 1.0))
        result = result.at[:, i, 5, :].set(base)
        tail = (-0.05, -0.10, -0.15) if not is_dark else (0.05, 0.10, 0.15)
        for j, d in zip(range(6, 9), tail):
            result = result.at[:, i, j, :].set(jnp.clip(base + d, 0.0, 1.0))
    return result


def reference_forward(x, p):
    B = x.shape[0]
    h = _leaky_relu(x @ p["w_e1"] + p["b_e1"])
    feats = _leaky_relu(h @ p["w_e2"] + p["b_e2"])
    branch_in = jnp.concatenate([feats, x], axis=1)                       # (B, 146)
    light_raw = jax.nn.sigmoid(
        _leaky_relu(branch_in @ p["w_l1"] + p["b_l1"]) @ p["w_l2"] + p["b_l2"])
    dark_raw = jax.nn.sigmoid(
        _leaky_relu(branch_in @ p["w_d1"] + p["b_d1"]) @ p["w_d2"] + p["b_d2"])
    light = light_raw.reshape(B, 6, 9, 3)
    dark = dark_raw.reshape(B, 6, 9, 3)
    xr = x.reshape(B, 6, 3)
    light_res = _apply_color_rules_ref(light, xr, is_dark=False)
    dark_res = _apply_color_rules_ref(dark, xr, is_dark=True)
    return jnp.concatenate([light_res.reshape(B, 162), dark_res.reshape(B, 162)], axis=1)


def init_mlp_params(key):
    dims = [("w_e1", (18, 64)), ("b_e1", (64,)), ("w_e2", (64, 128)), ("b_e2", (128,)),
            ("w_l1", (146, 192)), ("b_l1", (192,)), ("w_l2", (192, 162)), ("b_l2", (162,)),
            ("w_d1", (146, 192)), ("b_d1", (192,)), ("w_d2", (192, 162)), ("b_d2", (162,))]
    ks = jax.random.split(key, len(dims))
    return {name: 0.1 * jax.random.normal(k, shape, jnp.float32)
            for k, (name, shape) in zip(ks, dims)}


if __name__ == "__main__":
    key = jax.random.PRNGKey(0)
    kx, kp = jax.random.split(key)
    B = 8
    x = jax.random.uniform(kx, (B, INPUT_DIM), dtype=jnp.float32)  # 6 colors x 3 channels
    params = init_mlp_params(kp)   # used only by the full-forward reference (dead in fwd)

    fwd = jax.jit(color_preserving_generator_forward)
    out = jax.block_until_ready(fwd(x))

    ref = reference_forward(x, params)
    assert out.shape == (B, OUT_DIM)
    assert jnp.allclose(out, ref, atol=1e-5, rtol=1e-5), \
        "Pallas output does not match full-forward reference"
    print("KERNEL_OK")
</pallas_src>

<mosaic_0001>
module attributes {stable_mosaic.version = 11 : i64} {
  func.func @_color_rules_kernel(%arg0: i32, %arg1: memref<8x18xf32, #tpu.memory_space<vmem>>, %arg2: memref<18x324xf32, #tpu.memory_space<vmem>>, %arg3: memref<6x324xf32, #tpu.memory_space<vmem>>, %arg4: memref<8x324xf32, #tpu.memory_space<vmem>>) attributes {dimension_semantics = [#tpu.dimension_semantics<parallel>], iteration_bounds = array<i64: 1>, scalar_prefetch = 0 : i64, scratch_operands = 0 : i64, tpu.core_type = #tpu.core_type<tc>, window_params = [{transform_indices = @transform_0, window_bounds = array<i64: 8, 18>}, {pipeline_mode = #tpu.pipeline_mode<synchronous>, transform_indices = @transform_1, window_bounds = array<i64: 18, 324>}, {pipeline_mode = #tpu.pipeline_mode<synchronous>, transform_indices = @transform_2, window_bounds = array<i64: 6, 324>}, {transform_indices = @transform_3, window_bounds = array<i64: 8, 324>}]} {
    %c0 = arith.constant 0 : index
    %c0_0 = arith.constant 0 : index
    %0 = vector.load %arg1[%c0, %c0_0] : memref<8x18xf32, #tpu.memory_space<vmem>>, vector<8x18xf32>
    %c0_1 = arith.constant 0 : index
    %c0_2 = arith.constant 0 : index
    %1 = vector.load %arg2[%c0_1, %c0_2] : memref<18x324xf32, #tpu.memory_space<vmem>>, vector<18x324xf32>
    %cst = arith.constant dense<0.000000e+00> : vector<8x324xf32>
    %2 = tpu.matmul %0, %1, %cst {dimension_numbers = #tpu.dot_dimension_numbers<[1], [0], [0], [1], [0, 0, 1, 1], [], []>, precision = #tpu.contract_precision<fp32>} : vector<8x18xf32>, vector<18x324xf32>, vector<8x324xf32> -> vector<8x324xf32>
    %c0_3 = arith.constant 0 : index
    %c0_4 = arith.constant 0 : index
    %3 = vector.load %arg3[%c0_3, %c0_4] : memref<6x324xf32, #tpu.memory_space<vmem>>, vector<1x324xf32>
    %4 = vector.broadcast %3 : vector<1x324xf32> to vector<8x324xf32>
    %5 = arith.addf %2, %4 : vector<8x324xf32>
    %c1 = arith.constant 1 : index
    %c0_5 = arith.constant 0 : index
    %6 = vector.load %arg3[%c1, %c0_5] : memref<6x324xf32, #tpu.memory_space<vmem>>, vector<1x324xf32>
    %7 = vector.broadcast %6 : vector<1x324xf32> to vector<8x324xf32>
    %8 = arith.maximumf %5, %7 : vector<8x324xf32>
    %c2 = arith.constant 2 : index
    %c0_6 = arith.constant 0 : index
    %9 = vector.load %arg3[%c2, %c0_6] : memref<6x324xf32, #tpu.memory_space<vmem>>, vector<1x324xf32>
    %10 = vector.broadcast %9 : vector<1x324xf32> to vector<8x324xf32>
    %11 = arith.minimumf %8, %10 : vector<8x324xf32>
    %c3 = arith.constant 3 : index
    %c0_7 = arith.constant 0 : index
    %12 = vector.load %arg3[%c3, %c0_7] : memref<6x324xf32, #tpu.memory_space<vmem>>, vector<1x324xf32>
    %13 = vector.broadcast %12 : vector<1x324xf32> to vector<8x324xf32>
    %14 = arith.addf %11, %13 : vector<8x324xf32>
    %c4 = arith.constant 4 : index
    %c0_8 = arith.constant 0 : index
    %15 = vector.load %arg3[%c4, %c0_8] : memref<6x324xf32, #tpu.memory_space<vmem>>, vector<1x324xf32>
    %16 = vector.broadcast %15 : vector<1x324xf32> to vector<8x324xf32>
    %17 = arith.maximumf %14, %16 : vector<8x324xf32>
    %c5 = arith.constant 5 : index
    %c0_9 = arith.constant 0 : index
    %18 = vector.load %arg3[%c5, %c0_9] : memref<6x324xf32, #tpu.memory_space<vmem>>, vector<1x324xf32>
    %19 = vector.broadcast %18 : vector<1x324xf32> to vector<8x324xf32>
    %20 = arith.minimumf %17, %19 : vector<8x324xf32>
    %c0_10 = arith.constant 0 : index
    %c0_11 = arith.constant 0 : index
    %21 = vector.load %arg4[%c0_10, %c0_11] : memref<8x324xf32, #tpu.memory_space<vmem>>, vector<8x324xf32>
    tpu.vector_store %arg4[%c0_10, %c0_11], %20 {strides = array<i32>} : memref<8x324xf32, #tpu.memory_space<vmem>>, vector<8x324xf32>,
    return
  }
  func.func @transform_0(%arg0: i32) -> (i32, i32) {
    %c0_i32 = arith.constant 0 : i32
    %c0_i32_0 = arith.constant 0 : i32
    return %arg0, %c0_i32 : i32, i32
  }
  func.func @transform_1(%arg0: i32) -> (i32, i32) {
    %c0_i32 = arith.constant 0 : i32
    %c0_i32_0 = arith.constant 0 : i32
    %c0_i32_1 = arith.constant 0 : i32
    return %c0_i32, %c0_i32_0 : i32, i32
  }
  func.func @transform_2(%arg0: i32) -> (i32, i32) {
    %c0_i32 = arith.constant 0 : i32
    %c0_i32_0 = arith.constant 0 : i32
    %c0_i32_1 = arith.constant 0 : i32
    return %c0_i32, %c0_i32_0 : i32, i32
  }
  func.func @transform_3(%arg0: i32) -> (i32, i32) {
    %c0_i32 = arith.constant 0 : i32
    %c0_i32_0 = arith.constant 0 : i32
    return %arg0, %c0_i32 : i32, i32
  }
}

</mosaic_0001>

<llo_original>
// kernel: color_preserving_generator_forward.1
$region0: #{color_preserving_generator_forward.1}
  #allocation0 [shape = 'u32[]', space=smem, size = 0x4, offset = 0x4, fixed_abs, tag = 'smem constant byte address 0x4 - core index']
  #allocation1 [shape = 'u32[144,128]{1,0:T(1,128)}', space=vmem, size = 0x12000, scoped, tag = 'internal scratch']
  %s0 = inlined_call_operand.hbm [shape: f32[8,18], index: 0, kind: input, shape index: {}]
  %s1 = inlined_call_operand.hbm [shape: f32[18,324], index: 1, kind: input, shape index: {}]
  %s2 = inlined_call_operand.hbm [shape: f32[6,324], index: 2, kind: input, shape index: {}]
  %s3 = inlined_call_operand.hbm [shape: f32[8,324], index: 3, kind: output, shape index: {}]
  %s4 = sld [smem:[#allocation0]]
  $region34: #{color_preserving_generator_forward.1} parent=0
    _
  %s6 = ssub.s32 1, %s4
  %s7 = scalar_select 0, %s6, %s4
  $region1: #{color_preserving_generator_forward.1} parent=0
    #allocation2 [shape = 'u8[4096]{0}', space=vmem, size = 0x1000, scoped, tag = 'input window, operand 0, single buffered']
    #allocation3 [shape = 's32[1]{0}', space=sflag, size = 0x4, scoped, tag = 'scoped memory for color_preserving_generator_forward.1']
    #allocation4 [shape = 's32[1]{0}', space=sflag, size = 0x4, scoped, tag = 'scoped memory for color_preserving_generator_forward.1']
    #allocation5 [shape = 'u8[36864]{0}', space=vmem, size = 0x9000, scoped, tag = 'input window, operand 1, single buffered']
    #allocation6 [shape = 's32[1]{0}', space=sflag, size = 0x4, scoped, tag = 'scoped memory for color_preserving_generator_forward.1']
    #allocation7 [shape = 'u8[12288]{0}', space=vmem, size = 0x3000, scoped, tag = 'input window, operand 2, single buffered']
    #allocation8 [shape = 'u8[12288]{0}', space=vmem, size = 0x3000, scoped, tag = 'output window, operand 0, single buffered']
    %8 = vsyncpa [#allocation3], 0
    %9 = vsyncpa [#allocation6], 0
    %10 = vsyncpa [#allocation4], 0
    // Predicated region
    $region2: #{color_preserving_generator_forward.1} parent=1 // pred_check
      _
    $region3: #{color_preserving_generator_forward.1} parent=1 // pred_check_branch
      %12 = sbr.rel (0) target = $region5
    $region4: #{color_preserving_generator_forward.1} parent=1 // pred_region
      %s14 = ssub.s32 128, 128
      %15 = vsyncadd [#allocation3], %s14
      %s17 = sshll.u32 [#allocation2], 4
      %s18 = int_to_ptr.vmem [resolvable:$true] %s17
      %20 = dma.hbm_to_vmem [thread:$0]  %s0, 128, %s18, [#allocation3]
    $region5: #{color_preserving_generator_forward.1} parent=1 // pred_fallthru
      _
    // Predicated region
    $region6: #{color_preserving_generator_forward.1} parent=1 // pred_check
      _
    $region7: #{color_preserving_generator_forward.1} parent=1 // pred_check_branch
      %22 = sbr.rel (0) target = $region9
    $region8: #{color_preserving_generator_forward.1} parent=1 // pred_region
      %s24 = ssub.s32 1152, 1152
      %25 = vsyncadd [#allocation6], %s24
      %s26 = sshll.u32 [#allocation5], 4
      %s27 = int_to_ptr.vmem [resolvable:$true] %s26
      %32 = dma.hbm_to_vmem [thread:$0]  %s1, 1152, %s27, [#allocation6], 384, 384, 24
    $region9: #{color_preserving_generator_forward.1} parent=1 // pred_fallthru
      _
    // Predicated region
    $region10: #{color_preserving_generator_forward.1} parent=1 // pred_check
      _
    $region11: #{color_preserving_generator_forward.1} parent=1 // pred_check_branch
      %34 = sbr.rel (0) target = $region13
    $region12: #{color_preserving_generator_forward.1} parent=1 // pred_region
      %s36 = ssub.s32 384, 384
      %37 = vsyncadd [#allocation6], %s36
      %s39 = sshll.u32 [#allocation7], 4
      %s40 = int_to_ptr.vmem [resolvable:$true] %s39
      %42 = dma.hbm_to_vmem [thread:$0]  %s2, 384, %s40, [#allocation6]
    $region13: #{color_preserving_generator_forward.1} parent=1 // pred_fallthru
      _
    // Predicated region
    $region14: #{color_preserving_generator_forward.1} parent=1 // pred_check
      _
    $region15: #{color_preserving_generator_forward.1} parent=1 // pred_check_branch
      %44 = sbr.rel (0) target = $region17
    $region16: #{color_preserving_generator_forward.1} parent=1 // pred_region
      %45 = dma.done [#allocation3], 128
    $region17: #{color_preserving_generator_forward.1} parent=1 // pred_fallthru
      _
    // Predicated region
    $region18: #{color_preserving_generator_forward.1} parent=1 // pred_check
      _
    $region19: #{color_preserving_generator_forward.1} parent=1 // pred_check_branch
      %47 = sbr.rel (0) target = $region21
    $region20: #{color_preserving_generator_forward.1} parent=1 // pred_region
      %48 = dma.done [#allocation6], 1152
    $region21: #{color_preserving_generator_forward.1} parent=1 // pred_fallthru
      _
    // Predicated region
    $region22: #{color_preserving_generator_forward.1} parent=1 // pred_check
      _
    $region23: #{color_preserving_generator_forward.1} parent=1 // pred_check_branch
      %50 = sbr.rel (0) target = $region25
    $region24: #{color_preserving_generator_forward.1} parent=1 // pred_region
      %51 = dma.done [#allocation6], 384
    $region25: #{color_preserving_generator_forward.1} parent=1 // pred_fallthru
      _
    %v52 = vld [vmem:[#allocation2] sm:$0xff]
    %v53 = vld [vmem:[#allocation5] sm:$0xff]
    %v54 = vld [vmem:[#allocation5 + $0x8] sm:$0xff]
    %v55 = vld [vmem:[#allocation5 + $0x10] sm:$0xff]
    %v56 = vld [vmem:[#allocation5 + $0x18] sm:$0xff]
    %v57 = vld [vmem:[#allocation5 + $0x20] sm:$0xff]
    %v58 = vld [vmem:[#allocation5 + $0x28] sm:$0xff]
    %v59 = vld [vmem:[#allocation5 + $0x30] sm:$0x3]
    %v60 = vld [vmem:[#allocation5 + $0x38] sm:$0x3]
    %v61 = vld [vmem:[#allocation5 + $0x40] sm:$0x3]
    %v62 = vld [vmem:[#allocation7] ss:$8 sm:$0x7]
    %v64 = vlaneseq
    %v65 = vshrl.u32 %v64, 7
    %v66 = vsub.s32 0, %v65
    %v67 = vrot.slane %v62, %v66
    %v68 = vlaneseq
    %v69 = vshrl.u32 %v68, 7
    %v70 = vsub.s32 1, %v69
    %v71 = vrot.slane %v62, %v70
    %v72 = vlaneseq
    %v73 = vshrl.u32 %v72, 7
    %v74 = vsub.s32 2, %v73
    %v75 = vrot.slane %v62, %v74
    %vm79 = vcmask 146432
    %v81 = vsel %vm79, %v52, 0
    %vm83 = vcmask 1041408
    %v85 = vsel %vm83, %v59, 0
    %v88 = vsel %vm83, %v60, 0
    %v91 = vsel %vm83, %v61, 0
    %v93 = vand.u32 %v54, 4294901760
    %94 = vmatprep.subr.mxu0 %v93
    %v95 = vand.u32 %v53, 4294901760
    %96 = vmatpush1.msra.mxu0 %v95
    %v97 = vand.u32 %v57, 4294901760
    %98 = vmatprep.subr.mxu0 %v97
    %v99 = vand.u32 %v56, 4294901760
    %100 = vmatpush1.msra.mxu0 %v99
    %v101 = vand.u32 %v88, 4294901760
    %102 = vmatprep.subr.mxu0 %v101
    %v103 = vand.u32 %v85, 4294901760
    %104 = vmatpush1.msra.mxu0 %v103
    %105 = vmatprep.subr.mxu0 0.0
    %106 = vmatpush1.msra.mxu0 0.0
    %107 = vmatprep.subr.mxu0 0.0
    %108 = vmatpush1.msra.mxu0 0.0
    %109 = vmatprep.subr.mxu0 0.0
    %110 = vmatpush1.msra.mxu0 0.0
    %111 = vmatprep.subr.mxu0 0.0
    %112 = vmatpush1.msra.mxu0 0.0
    %113 = vmatprep.subr.mxu0 0.0
    %114 = vmatpush1.msra.mxu0 0.0
    %115 = vmatprep.subr.mxu0 0.0
    %116 = vmatpush1.msra.mxu0 0.0
    %117 = vmatprep.subr.mxu0 0.0
    %118 = vmatpush1.msra.mxu0 0.0
    %119 = vmatprep.subr.mxu0 0.0
    %120 = vmatpush1.msra.mxu0 0.0
    %121 = vmatprep.subr.mxu0 0.0
    %122 = vmatpush1.msra.mxu0 0.0
    %123 = vmatprep.subr.mxu0 0.0
    %124 = vmatpush1.msra.mxu0 0.0
    %125 = vmatprep.subr.mxu0 0.0
    %126 = vmatpush1.msra.mxu0 0.0
    %127 = vmatprep.subr.mxu0 0.0
    %128 = vmatpush1.msra.mxu0 0.0
    %129 = vmatprep.subr.mxu0 0.0
    %130 = vmatpush1.msra.mxu0 0.0
    %131 = vmatprep.subr.mxu0 0.0
    %132 = vmatpush1.msra.mxu0 0.0
    %133 = vmatprep.subr.mxu0 0.0
    %134 = vmatpush1.msra.mxu0 0.0
    %135 = vmatprep.subr.mxu0 0.0
    %136 = vmatpush1.msra.mxu0 0.0
    %137 = vmatprep.subr.mxu0 0.0
    %138 = vmatpush1.msra.mxu0 0.0
    %139 = vmatprep.subr.mxu0 0.0
    %140 = vmatpush1.msra.mxu0 0.0
    %141 = vmatprep.subr.mxu0 0.0
    %142 = vmatpush1.msra.mxu0 0.0
    %143 = vmatprep.subr.mxu0 0.0
    %144 = vmatpush1.msra.mxu0 0.0
    %145 = vmatprep.subr.mxu0 0.0
    %146 = vmatpush1.msra.mxu0 0.0
    %147 = vmatprep.subr.mxu0 0.0
    %148 = vmatpush1.msra.mxu0 0.0
    %149 = vmatprep.subr.mxu0 0.0
    %150 = vmatpush1.msra.mxu0 0.0
    %151 = vmatprep.subr.mxu0 0.0
    %152 = vmatpush1.msra.mxu0 0.0
    %153 = vmatprep.subr.mxu0 0.0
    %154 = vmatpush1.msra.mxu0 0.0
    %155 = vmatprep.subr.mxu0 0.0
    %156 = vmatpush1.msra.mxu0 0.0
    %157 = vmatprep.subr.mxu0 0.0
    %158 = vmatpush1.msra.mxu0 0.0
    %159 = vmatprep.subr.mxu0 0.0
    %160 = vmatpush1.msra.mxu0 0.0
    %161 = vmatprep.subr.mxu0 0.0
    %162 = vmatpush1.msra.mxu0 0.0
    %163 = vmatprep.mubr.f32.mxu0 0.0
    %v164 = vand.u32 %v81, 4294901760
    %v165 = vsub.f32 %v81, %v164
    %v166 = vand.u32 %v165, 4294901760
    %v167 = vsub.f32 %v165, %v166
    %v168 = vand.u32 %v167, 4294901760
    %169 = vmatmul.mubr.f32.gmra.mrb[0].mxu0 %v168
    %v170 = vpop.f32.mrb[0].mxu0
    %v171 = vadd.f32 %v67, %v170
    %v172 = vpop.f32.mrb[0].mxu0
    %v173 = vadd.f32 %v71, %v172
    %174 = vdwg.mxu0
    %v175 = vand.u32 %v54, 4294901760
    %v176 = vsub.f32 %v54, %v175
    %v177 = vand.u32 %v176, 4294901760
    %v178 = vsub.f32 %v176, %v177
    %v179 = vand.u32 %v178, 4294901760
    %180 = vmatprep.subr.mxu0 %v179
    %v181 = vand.u32 %v53, 4294901760
    %v182 = vsub.f32 %v53, %v181
    %v183 = vand.u32 %v182, 4294901760
    %v184 = vsub.f32 %v182, %v183
    %v185 = vand.u32 %v184, 4294901760
    %186 = vmatpush1.msra.mxu0 %v185
    %v187 = vand.u32 %v57, 4294901760
    %v188 = vsub.f32 %v57, %v187
    %v189 = vand.u32 %v188, 4294901760
    %v190 = vsub.f32 %v188, %v189
    %v191 = vand.u32 %v190, 4294901760
    %192 = vmatprep.subr.mxu0 %v191
    %v193 = vand.u32 %v56, 4294901760
    %v194 = vsub.f32 %v56, %v193
    %v195 = vand.u32 %v194, 4294901760
    %v196 = vsub.f32 %v194, %v195
    %v197 = vand.u32 %v196, 4294901760
    %198 = vmatpush1.msra.mxu0 %v197
    %v199 = vand.u32 %v88, 4294901760
    %v200 = vsub.f32 %v88, %v199
    %v201 = vand.u32 %v200, 4294901760
    %v202 = vsub.f32 %v200, %v201
    %v203 = vand.u32 %v202, 4294901760
    %204 = vmatprep.subr.mxu0 %v203
    %v205 = vand.u32 %v85, 4294901760
    %v206 = vsub.f32 %v85, %v205
    %v207 = vand.u32 %v206, 4294901760
    %v208 = vsub.f32 %v206, %v207
    %v209 = vand.u32 %v208, 4294901760
    %210 = vmatpush1.msra.mxu0 %v209
    %211 = vmatprep.subr.mxu0 0.0
    %212 = vmatpush1.msra.mxu0 0.0
    %213 = vmatprep.subr.mxu0 0.0
    %214 = vmatpush1.msra.mxu0 0.0
    %215 = vmatprep.subr.mxu0 0.0
    %216 = vmatpush1.msra.mxu0 0.0
    %217 = vmatprep.subr.mxu0 0.0
    %218 = vmatpush1.msra.mxu0 0.0
    %219 = vmatprep.subr.mxu0 0.0
    %220 = vmatpush1.msra.mxu0 0.0
    %221 = vmatprep.subr.mxu0 0.0
    %222 = vmatpush1.msra.mxu0 0.0
    %223 = vmatprep.subr.mxu0 0.0
    %224 = vmatpush1.msra.mxu0 0.0
    %225 = vmatprep.subr.mxu0 0.0
    %226 = vmatpush1.msra.mxu0 0.0
    %227 = vmatprep.subr.mxu0 0.0
    %228 = vmatpush1.msra.mxu0 0.0
    %229 = vmatprep.subr.mxu0 0.0
    %230 = vmatpush1.msra.mxu0 0.0
    %231 = vmatprep.subr.mxu0 0.0
    %232 = vmatpush1.msra.mxu0 0.0
    %233 = vmatprep.subr.mxu0 0.0
    %234 = vmatpush1.msra.mxu0 0.0
    %235 = vmatprep.subr.mxu0 0.0
    %236 = vmatpush1.msra.mxu0 0.0
    %237 = vmatprep.subr.mxu0 0.0
    %238 = vmatpush1.msra.mxu0 0.0
    %239 = vmatprep.subr.mxu0 0.0
    %240 = vmatpush1.msra.mxu0 0.0
    %241 = vmatprep.subr.mxu0 0.0
    %242 = vmatpush1.msra.mxu0 0.0
    %243 = vmatprep.subr.mxu0 0.0
    %244 = vmatpush1.msra.mxu0 0.0
    %245 = vmatprep.subr.mxu0 0.0
    %246 = vmatpush1.msra.mxu0 0.0
    %247 = vmatprep.subr.mxu0 0.0
    %248 = vmatpush1.msra.mxu0 0.0
    %249 = vmatprep.subr.mxu0 0.0
    %250 = vmatpush1.msra.mxu0 0.0
    %251 = vmatprep.subr.mxu0 0.0
    %252 = vmatpush1.msra.mxu0 0.0
    %253 = vmatprep.subr.mxu0 0.0
    %254 = vmatpush1.msra.mxu0 0.0
    %255 = vmatprep.subr.mxu0 0.0
    %256 = vmatpush1.msra.mxu0 0.0
    %257 = vmatprep.subr.mxu0 0.0
    %258 = vmatpush1.msra.mxu0 0.0
    %259 = vmatprep.subr.mxu0 0.0
    %260 = vmatpush1.msra.mxu0 0.0
    %261 = vmatprep.subr.mxu0 0.0
    %262 = vmatpush1.msra.mxu0 0.0
    %263 = vmatprep.subr.mxu0 0.0
    %264 = vmatpush1.msra.mxu0 0.0
    %265 = vmatprep.subr.mxu0 0.0
    %266 = vmatpush1.msra.mxu0 0.0
    %267 = vmatprep.subr.mxu0 0.0
    %268 = vmatpush1.msra.mxu0 0.0
    %269 = vmatprep.mubr.f32.mxu0 0.0
    %v270 = vand.u32 %v81, 4294901760
    %271 = vmatmul.mubr.f32.gmra.mrb[0].mxu0 %v270
    %v272 = vpop.f32.mrb[0].mxu0
    %v273 = vadd.f32 %v171, %v272
    %v274 = vpop.f32.mrb[0].mxu0
    %v275 = vadd.f32 %v173, %v274
    %276 = vdwg.mxu0
    %v277 = vand.u32 %v54, 4294901760
    %v278 = vsub.f32 %v54, %v277
    %279 = vmatprep.subr.mxu0 %v278
    %v280 = vand.u32 %v53, 4294901760
    %v281 = vsub.f32 %v53, %v280
    %282 = vmatpush1.msra.mxu0 %v281
    %v283 = vand.u32 %v57, 4294901760
    %v284 = vsub.f32 %v57, %v283
    %285 = vmatprep.subr.mxu0 %v284
    %v286 = vand.u32 %v56, 4294901760
    %v287 = vsub.f32 %v56, %v286
    %288 = vmatpush1.msra.mxu0 %v287
    %v289 = vand.u32 %v88, 4294901760
    %v290 = vsub.f32 %v88, %v289
    %291 = vmatprep.subr.mxu0 %v290
    %v292 = vand.u32 %v85, 4294901760
    %v293 = vsub.f32 %v85, %v292
    %294 = vmatpush1.msra.mxu0 %v293
    %295 = vmatprep.subr.mxu0 0.0
    %296 = vmatpush1.msra.mxu0 0.0
    %297 = vmatprep.subr.mxu0 0.0
    %298 = vmatpush1.msra.mxu0 0.0
    %299 = vmatprep.subr.mxu0 0.0
    %300 = vmatpush1.msra.mxu0 0.0
    %301 = vmatprep.subr.mxu0 0.0
    %302 = vmatpush1.msra.mxu0 0.0
    %303 = vmatprep.subr.mxu0 0.0
    %304 = vmatpush1.msra.mxu0 0.0
    %305 = vmatprep.subr.mxu0 0.0
    %306 = vmatpush1.msra.mxu0 0.0
    %307 = vmatprep.subr.mxu0 0.0
    %308 = vmatpush1.msra.mxu0 0.0
    %309 = vmatprep.subr.mxu0 0.0
    %310 = vmatpush1.msra.mxu0 0.0
    %311 = vmatprep.subr.mxu0 0.0
    %312 = vmatpush1.msra.mxu0 0.0
    %313 = vmatprep.subr.mxu0 0.0
    %314 = vmatpush1.msra.mxu0 0.0
    %315 = vmatprep.subr.mxu0 0.0
    %316 = vmatpush1.msra.mxu0 0.0
    %317 = vmatprep.subr.mxu0 0.0
    %318 = vmatpush1.msra.mxu0 0.0
    %319 = vmatprep.subr.mxu0 0.0
    %320 = vmatpush1.msra.mxu0 0.0
    %321 = vmatprep.subr.mxu0 0.0
    %322 = vmatpush1.msra.mxu0 0.0
    %323 = vmatprep.subr.mxu0 0.0
    %324 = vmatpush1.msra.mxu0 0.0
    %325 = vmatprep.subr.mxu0 0.0
    %326 = vmatpush1.msra.mxu0 0.0
    %327 = vmatprep.subr.mxu0 0.0
    %328 = vmatpush1.msra.mxu0 0.0
    %329 = vmatprep.subr.mxu0 0.0
    %330 = vmatpush1.msra.mxu0 0.0
    %331 = vmatprep.subr.mxu0 0.0
    %332 = vmatpush1.msra.mxu0 0.0
    %333 = vmatprep.subr.mxu0 0.0
    %334 = vmatpush1.msra.mxu0 0.0
    %335 = vmatprep.subr.mxu0 0.0
    %336 = vmatpush1.msra.mxu0 0.0
    %337 = vmatprep.subr.mxu0 0.0
    %338 = vmatpush1.msra.mxu0 0.0
    %339 = vmatprep.subr.mxu0 0.0
    %340 = vmatpush1.msra.mxu0 0.0
    %341 = vmatprep.subr.mxu0 0.0
    %342 = vmatpush1.msra.mxu0 0.0
    %343 = vmatprep.subr.mxu0 0.0
    %344 = vmatpush1.msra.mxu0 0.0
    %345 = vmatprep.subr.mxu0 0.0
    %346 = vmatpush1.msra.mxu0 0.0
    %347 = vmatprep.subr.mxu0 0.0
    %348 = vmatpush1.msra.mxu0 0.0
    %349 = vmatprep.subr.mxu0 0.0
    %350 = vmatpush1.msra.mxu0 0.0
    %351 = vmatprep.subr.mxu0 0.0
    %352 = vmatpush1.msra.mxu0 0.0
    %353 = vmatprep.mubr.f32.mxu0 0.0
    %v354 = vand.u32 %v81, 4294901760
    %v355 = vsub.f32 %v81, %v354
    %356 = vmatmul.mubr.f32.gmra.mrb[0].mxu0 %v355
    %v357 = vpop.f32.mrb[0].mxu0
    %v358 = vadd.f32 %v273, %v357
    %v359 = vpop.f32.mrb[0].mxu0
    %v360 = vadd.f32 %v275, %v359
    %361 = vdwg.mxu0
    %v362 = vand.u32 %v54, 4294901760
    %363 = vmatprep.subr.mxu0 %v362
    %v364 = vand.u32 %v53, 4294901760
    %365 = vmatpush1.msra.mxu0 %v364
    %v366 = vand.u32 %v57, 4294901760
    %367 = vmatprep.subr.mxu0 %v366
    %v368 = vand.u32 %v56, 4294901760
    %369 = vmatpush1.msra.mxu0 %v368
    %v370 = vand.u32 %v88, 4294901760
    %371 = vmatprep.subr.mxu0 %v370
    %v372 = vand.u32 %v85, 4294901760
    %373 = vmatpush1.msra.mxu0 %v372
    %374 = vmatprep.subr.mxu0 0.0
    %375 = vmatpush1.msra.mxu0 0.0
    %376 = vmatprep.subr.mxu0 0.0
    %377 = vmatpush1.msra.mxu0 0.0
    %378 = vmatprep.subr.mxu0 0.0
    %379 = vmatpush1.msra.mxu0 0.0
    %380 = vmatprep.subr.mxu0 0.0
    %381 = vmatpush1.msra.mxu0 0.0
    %382 = vmatprep.subr.mxu0 0.0
    %383 = vmatpush1.msra.mxu0 0.0
    %384 = vmatprep.subr.mxu0 0.0
    %385 = vmatpush1.msra.mxu0 0.0
    %386 = vmatprep.subr.mxu0 0.0
    %387 = vmatpush1.msra.mxu0 0.0
    %388 = vmatprep.subr.mxu0 0.0
    %389 = vmatpush1.msra.mxu0 0.0
    %390 = vmatprep.subr.mxu0 0.0
    %391 = vmatpush1.msra.mxu0 0.0
    %392 = vmatprep.subr.mxu0 0.0
    %393 = vmatpush1.msra.mxu0 0.0
    %394 = vmatprep.subr.mxu0 0.0
    %395 = vmatpush1.msra.mxu0 0.0
    %396 = vmatprep.subr.mxu0 0.0
    %397 = vmatpush1.msra.mxu0 0.0
    %398 = vmatprep.subr.mxu0 0.0
    %399 = vmatpush1.msra.mxu0 0.0
    %400 = vmatprep.subr.mxu0 0.0
    %401 = vmatpush1.msra.mxu0 0.0
    %402 = vmatprep.subr.mxu0 0.0
    %403 = vmatpush1.msra.mxu0 0.0
    %404 = vmatprep.subr.mxu0 0.0
    %405 = vmatpush1.msra.mxu0 0.0
    %406 = vmatprep.subr.mxu0 0.0
    %407 = vmatpush1.msra.mxu0 0.0
    %408 = vmatprep.subr.mxu0 0.0
    %409 = vmatpush1.msra.mxu0 0.0
    %410 = vmatprep.subr.mxu0 0.0
    %411 = vmatpush1.msra.mxu0 0.0
    %412 = vmatprep.subr.mxu0 0.0
    %413 = vmatpush1.msra.mxu0 0.0
    %414 = vmatprep.subr.mxu0 0.0
    %415 = vmatpush1.msra.mxu0 0.0
    %416 = vmatprep.subr.mxu0 0.0
    %417 = vmatpush1.msra.mxu0 0.0
    %418 = vmatprep.subr.mxu0 0.0
    %419 = vmatpush1.msra.mxu0 0.0
    %420 = vmatprep.subr.mxu0 0.0
    %421 = vmatpush1.msra.mxu0 0.0
    %422 = vmatprep.subr.mxu0 0.0
    %423 = vmatpush1.msra.mxu0 0.0
    %424 = vmatprep.subr.mxu0 0.0
    %425 = vmatpush1.msra.mxu0 0.0
    %426 = vmatprep.subr.mxu0 0.0
    %427 = vmatpush1.msra.mxu0 0.0
    %428 = vmatprep.subr.mxu0 0.0
    %429 = vmatpush1.msra.mxu0 0.0
    %430 = vmatprep.subr.mxu0 0.0
    %431 = vmatpush1.msra.mxu0 0.0
    %432 = vmatprep.mubr.f32.mxu0 0.0
    %v433 = vand.u32 %v81, 4294901760
    %v434 = vsub.f32 %v81, %v433
    %v435 = vand.u32 %v434, 4294901760
    %436 = vmatmul.mubr.f32.gmra.mrb[0].mxu0 %v435
    %v437 = vpop.f32.mrb[0].mxu0
    %v438 = vadd.f32 %v358, %v437
    %v439 = vpop.f32.mrb[0].mxu0
    %v440 = vadd.f32 %v360, %v439
    %441 = vdwg.mxu0
    %v442 = vand.u32 %v54, 4294901760
    %v443 = vsub.f32 %v54, %v442
    %v444 = vand.u32 %v443, 4294901760
    %445 = vmatprep.subr.mxu0 %v444
    %v446 = vand.u32 %v53, 4294901760
    %v447 = vsub.f32 %v53, %v446
    %v448 = vand.u32 %v447, 4294901760
    %449 = vmatpush1.msra.mxu0 %v448
    %v450 = vand.u32 %v57, 4294901760
    %v451 = vsub.f32 %v57, %v450
    %v452 = vand.u32 %v451, 4294901760
    %453 = vmatprep.subr.mxu0 %v452
    %v454 = vand.u32 %v56, 4294901760
    %v455 = vsub.f32 %v56, %v454
    %v456 = vand.u32 %v455, 4294901760
    %457 = vmatpush1.msra.mxu0 %v456
    %v458 = vand.u32 %v88, 4294901760
    %v459 = vsub.f32 %v88, %v458
    %v460 = vand.u32 %v459, 4294901760
    %461 = vmatprep.subr.mxu0 %v460
    %v462 = vand.u32 %v85, 4294901760
    %v463 = vsub.f32 %v85, %v462
    %v464 = vand.u32 %v463, 4294901760
    %465 = vmatpush1.msra.mxu0 %v464
    %466 = vmatprep.subr.mxu0 0.0
    %467 = vmatpush1.msra.mxu0 0.0
    %468 = vmatprep.subr.mxu0 0.0
    %469 = vmatpush1.msra.mxu0 0.0
    %470 = vmatprep.subr.mxu0 0.0
    %471 = vmatpush1.msra.mxu0 0.0
    %472 = vmatprep.subr.mxu0 0.0
    %473 = vmatpush1.msra.mxu0 0.0
    %474 = vmatprep.subr.mxu0 0.0
    %475 = vmatpush1.msra.mxu0 0.0
    %476 = vmatprep.subr.mxu0 0.0
    %477 = vmatpush1.msra.mxu0 0.0
    %478 = vmatprep.subr.mxu0 0.0
    %479 = vmatpush1.msra.mxu0 0.0
    %480 = vmatprep.subr.mxu0 0.0
    %481 = vmatpush1.msra.mxu0 0.0
    %482 = vmatprep.subr.mxu0 0.0
    %483 = vmatpush1.msra.mxu0 0.0
    %484 = vmatprep.subr.mxu0 0.0
    %485 = vmatpush1.msra.mxu0 0.0
    %486 = vmatprep.subr.mxu0 0.0
    %487 = vmatpush1.msra.mxu0 0.0
    %488 = vmatprep.subr.mxu0 0.0
    %489 = vmatpush1.msra.mxu0 0.0
    %490 = vmatprep.subr.mxu0 0.0
    %491 = vmatpush1.msra.mxu0 0.0
    %492 = vmatprep.subr.mxu0 0.0
    %493 = vmatpush1.msra.mxu0 0.0
    %494 = vmatprep.subr.mxu0 0.0
    %495 = vmatpush1.msra.mxu0 0.0
    %496 = vmatprep.subr.mxu0 0.0
    %497 = vmatpush1.msra.mxu0 0.0
    %498 = vmatprep.subr.mxu0 0.0
    %499 = vmatpush1.msra.mxu0 0.0
    %500 = vmatprep.subr.mxu0 0.0
    %501 = vmatpush1.msra.mxu0 0.0
    %502 = vmatprep.subr.mxu0 0.0
    %503 = vmatpush1.msra.mxu0 0.0
    %504 = vmatprep.subr.mxu0 0.0
    %505 = vmatpush1.msra.mxu0 0.0
    %506 = vmatprep.subr.mxu0 0.0
    %507 = vmatpush1.msra.mxu0 0.0
    %508 = vmatprep.subr.mxu0 0.0
    %509 = vmatpush1.msra.mxu0 0.0
    %510 = vmatprep.subr.mxu0 0.0
    %511 = vmatpush1.msra.mxu0 0.0
    %512 = vmatprep.subr.mxu0 0.0
    %513 = vmatpush1.msra.mxu0 0.0
    %514 = vmatprep.subr.mxu0 0.0
    %515 = vmatpush1.msra.mxu0 0.0
    %516 = vmatprep.subr.mxu0 0.0
    %517 = vmatpush1.msra.mxu0 0.0
    %518 = vmatprep.subr.mxu0 0.0
    %519 = vmatpush1.msra.mxu0 0.0
    %520 = vmatprep.subr.mxu0 0.0
    %521 = vmatpush1.msra.mxu0 0.0
    %522 = vmatprep.subr.mxu0 0.0
    %523 = vmatpush1.msra.mxu0 0.0
    %524 = vmatprep.mubr.f32.mxu0 0.0
    %v525 = vand.u32 %v81, 4294901760
    %526 = vmatmul.mubr.f32.gmra.mrb[0].mxu0 %v525
    %v527 = vpop.f32.mrb[0].mxu0
    %v528 = vadd.f32 %v438, %v527
    %v529 = vpop.f32.mrb[0].mxu0
    %v530 = vadd.f32 %v440, %v529
    %531 = vdwg.mxu0
    %v532 = vand.u32 %v54, 4294901760
    %533 = vmatprep.subr.mxu0 %v532
    %v534 = vand.u32 %v53, 4294901760
    %535 = vmatpush1.msra.mxu0 %v534
    %v536 = vand.u32 %v57, 4294901760
    %537 = vmatprep.subr.mxu0 %v536
    %v538 = vand.u32 %v56, 4294901760
    %539 = vmatpush1.msra.mxu0 %v538
    %v540 = vand.u32 %v88, 4294901760
    %541 = vmatprep.subr.mxu0 %v540
    %v542 = vand.u32 %v85, 4294901760
    %543 = vmatpush1.msra.mxu0 %v542
    %544 = vmatprep.subr.mxu0 0.0
    %545 = vmatpush1.msra.mxu0 0.0
    %546 = vmatprep.subr.mxu0 0.0
    %547 = vmatpush1.msra.mxu0 0.0
    %548 = vmatprep.subr.mxu0 0.0
    %549 = vmatpush1.msra.mxu0 0.0
    %550 = vmatprep.subr.mxu0 0.0
    %551 = vmatpush1.msra.mxu0 0.0
    %552 = vmatprep.subr.mxu0 0.0
    %553 = vmatpush1.msra.mxu0 0.0
    %554 = vmatprep.subr.mxu0 0.0
    %555 = vmatpush1.msra.mxu0 0.0
    %556 = vmatprep.subr.mxu0 0.0
    %557 = vmatpush1.msra.mxu0 0.0
    %558 = vmatprep.subr.mxu0 0.0
    %559 = vmatpush1.msra.mxu0 0.0
    %560 = vmatprep.subr.mxu0 0.0
    %561 = vmatpush1.msra.mxu0 0.0
    %562 = vmatprep.subr.mxu0 0.0
    %563 = vmatpush1.msra.mxu0 0.0
    %564 = vmatprep.subr.mxu0 0.0
    %565 = vmatpush1.msra.mxu0 0.0
    %566 = vmatprep.subr.mxu0 0.0
    %567 = vmatpush1.msra.mxu0 0.0
    %568 = vmatprep.subr.mxu0 0.0
    %569 = vmatpush1.msra.mxu0 0.0
    %570 = vmatprep.subr.mxu0 0.0
    %571 = vmatpush1.msra.mxu0 0.0
    %572 = vmatprep.subr.mxu0 0.0
    %573 = vmatpush1.msra.mxu0 0.0
    %574 = vmatprep.subr.mxu0 0.0
    %575 = vmatpush1.msra.mxu0 0.0
    %576 = vmatprep.subr.mxu0 0.0
    %577 = vmatpush1.msra.mxu0 0.0
    %578 = vmatprep.subr.mxu0 0.0
    %579 = vmatpush1.msra.mxu0 0.0
    %580 = vmatprep.subr.mxu0 0.0
    %581 = vmatpush1.msra.mxu0 0.0
    %582 = vmatprep.subr.mxu0 0.0
    %583 = vmatpush1.msra.mxu0 0.0
    %584 = vmatprep.subr.mxu0 0.0
    %585 = vmatpush1.msra.mxu0 0.0
    %586 = vmatprep.subr.mxu0 0.0
    %587 = vmatpush1.msra.mxu0 0.0
    %588 = vmatprep.subr.mxu0 0.0
    %589 = vmatpush1.msra.mxu0 0.0
    %590 = vmatprep.subr.mxu0 0.0
    %591 = vmatpush1.msra.mxu0 0.0
    %592 = vmatprep.subr.mxu0 0.0
    %593 = vmatpush1.msra.mxu0 0.0
    %594 = vmatprep.subr.mxu0 0.0
    %595 = vmatpush1.msra.mxu0 0.0
    %596 = vmatprep.subr.mxu0 0.0
    %597 = vmatpush1.msra.mxu0 0.0
    %598 = vmatprep.subr.mxu0 0.0
    %599 = vmatpush1.msra.mxu0 0.0
    %600 = vmatprep.subr.mxu0 0.0
    %601 = vmatpush1.msra.mxu0 0.0
    %602 = vmatprep.mubr.f32.mxu0 0.0
    %v603 = vand.u32 %v81, 4294901760
    %604 = vmatmul.mubr.f32.gmra.mrb[0].mxu0 %v603
    %v605 = vpop.f32.mrb[0].mxu0
    %v606 = vadd.f32 %v528, %v605
    %v607 = vpop.f32.mrb[0].mxu0
    %v608 = vadd.f32 %v530, %v607
    %609 = vdwg.mxu0
    %610 = vmatprep.subr.mxu0 0.0
    %v611 = vand.u32 %v55, 4294901760
    %612 = vmatpush1.msra.mxu0 %v611
    %613 = vmatprep.subr.mxu0 0.0
    %v614 = vand.u32 %v58, 4294901760
    %615 = vmatpush1.msra.mxu0 %v614
    %616 = vmatprep.subr.mxu0 0.0
    %v617 = vand.u32 %v91, 4294901760
    %618 = vmatpush1.msra.mxu0 %v617
    %619 = vmatprep.subr.mxu0 0.0
    %620 = vmatpush1.msra.mxu0 0.0
    %621 = vmatprep.subr.mxu0 0.0
    %622 = vmatpush1.msra.mxu0 0.0
    %623 = vmatprep.subr.mxu0 0.0
    %624 = vmatpush1.msra.mxu0 0.0
    %625 = vmatprep.subr.mxu0 0.0
    %626 = vmatpush1.msra.mxu0 0.0
    %627 = vmatprep.subr.mxu0 0.0
    %628 = vmatpush1.msra.mxu0 0.0
    %629 = vmatprep.subr.mxu0 0.0
    %630 = vmatpush1.msra.mxu0 0.0
    %631 = vmatprep.subr.mxu0 0.0
    %632 = vmatpush1.msra.mxu0 0.0
    %633 = vmatprep.subr.mxu0 0.0
    %634 = vmatpush1.msra.mxu0 0.0
    %635 = vmatprep.subr.mxu0 0.0
    %636 = vmatpush1.msra.mxu0 0.0
    %637 = vmatprep.subr.mxu0 0.0
    %638 = vmatpush1.msra.mxu0 0.0
    %639 = vmatprep.subr.mxu0 0.0
    %640 = vmatpush1.msra.mxu0 0.0
    %641 = vmatprep.subr.mxu0 0.0
    %642 = vmatpush1.msra.mxu0 0.0
    %643 = vmatprep.subr.mxu0 0.0
    %644 = vmatpush1.msra.mxu0 0.0
    %645 = vmatprep.subr.mxu0 0.0
    %646 = vmatpush1.msra.mxu0 0.0
    %647 = vmatprep.subr.mxu0 0.0
    %648 = vmatpush1.msra.mxu0 0.0
    %649 = vmatprep.subr.mxu0 0.0
    %650 = vmatpush1.msra.mxu0 0.0
    %651 = vmatprep.subr.mxu0 0.0
    %652 = vmatpush1.msra.mxu0 0.0
    %653 = vmatprep.subr.mxu0 0.0
    %654 = vmatpush1.msra.mxu0 0.0
    %655 = vmatprep.subr.mxu0 0.0
    %656 = vmatpush1.msra.mxu0 0.0
    %657 = vmatprep.subr.mxu0 0.0
    %658 = vmatpush1.msra.mxu0 0.0
    %659 = vmatprep.subr.mxu0 0.0
    %660 = vmatpush1.msra.mxu0 0.0
    %661 = vmatprep.subr.mxu0 0.0
    %662 = vmatpush1.msra.mxu0 0.0
    %663 = vmatprep.subr.mxu0 0.0
    %664 = vmatpush1.msra.mxu0 0.0
    %665 = vmatprep.subr.mxu0 0.0
    %666 = vmatpush1.msra.mxu0 0.0
    %667 = vmatprep.subr.mxu0 0.0
    %668 = vmatpush1.msra.mxu0 0.0
    %669 = vmatprep.subr.mxu0 0.0
    %670 = vmatpush1.msra.mxu0 0.0
    %671 = vmatprep.subr.mxu0 0.0
    %672 = vmatpush1.msra.mxu0 0.0
    %673 = vmatprep.subr.mxu0 0.0
    %674 = vmatpush1.msra.mxu0 0.0
    %675 = vmatprep.subr.mxu0 0.0
    %676 = vmatpush1.msra.mxu0 0.0
    %677 = vmatprep.mubr.f32.mxu0 0.0
    %v678 = vand.u32 %v81, 4294901760
    %v679 = vsub.f32 %v81, %v678
    %v680 = vand.u32 %v679, 4294901760
    %v681 = vsub.f32 %v679, %v680
    %v682 = vand.u32 %v681, 4294901760
    %683 = vmatmul.mubr.f32.gmra.mrb[0].mxu0 %v682
    %v684 = vpop.f32.mrb[0].mxu0
    %v685 = vadd.f32 %v75, %v684
    %v686 = vpop.f32.mrb[0].mxu0
    %687 = vdwg.mxu0
    %688 = vmatprep.subr.mxu0 0.0
    %v689 = vand.u32 %v55, 4294901760
    %v690 = vsub.f32 %v55, %v689
    %v691 = vand.u32 %v690, 4294901760
    %v692 = vsub.f32 %v690, %v691
    %v693 = vand.u32 %v692, 4294901760
    %694 = vmatpush1.msra.mxu0 %v693
    %695 = vmatprep.subr.mxu0 0.0
    %v696 = vand.u32 %v58, 4294901760
    %v697 = vsub.f32 %v58, %v696
    %v698 = vand.u32 %v697, 4294901760
    %v699 = vsub.f32 %v697, %v698
    %v700 = vand.u32 %v699, 4294901760
    %701 = vmatpush1.msra.mxu0 %v700
    %702 = vmatprep.subr.mxu0 0.0
    %v703 = vand.u32 %v91, 4294901760
    %v704 = vsub.f32 %v91, %v703
    %v705 = vand.u32 %v704, 4294901760
    %v706 = vsub.f32 %v704, %v705
    %v707 = vand.u32 %v706, 4294901760
    %708 = vmatpush1.msra.mxu0 %v707
    %709 = vmatprep.subr.mxu0 0.0
    %710 = vmatpush1.msra.mxu0 0.0
    %711 = vmatprep.subr.mxu0 0.0
    %712 = vmatpush1.msra.mxu0 0.0
    %713 = vmatprep.subr.mxu0 0.0
    %714 = vmatpush1.msra.mxu0 0.0
    %715 = vmatprep.subr.mxu0 0.0
    %716 = vmatpush1.msra.mxu0 0.0
    %717 = vmatprep.subr.mxu0 0.0
    %718 = vmatpush1.msra.mxu0 0.0
    %719 = vmatprep.subr.mxu0 0.0
    %720 = vmatpush1.msra.mxu0 0.0
    %721 = vmatprep.subr.mxu0 0.0
    %722 = vmatpush1.msra.mxu0 0.0
    %723 = vmatprep.subr.mxu0 0.0
    %724 = vmatpush1.msra.mxu0 0.0
    %725 = vmatprep.subr.mxu0 0.0
    %726 = vmatpush1.msra.mxu0 0.0
    %727 = vmatprep.subr.mxu0 0.0
    %728 = vmatpush1.msra.mxu0 0.0
    %729 = vmatprep.subr.mxu0 0.0
    %730 = vmatpush1.msra.mxu0 0.0
    %731 = vmatprep.subr.mxu0 0.0
    %732 = vmatpush1.msra.mxu0 0.0
    %733 = vmatprep.subr.mxu0 0.0
    %734 = vmatpush1.msra.mxu0 0.0
    %735 = vmatprep.subr.mxu0 0.0
    %736 = vmatpush1.msra.mxu0 0.0
    %737 = vmatprep.subr.mxu0 0.0
    %738 = vmatpush1.msra.mxu0 0.0
    %739 = vmatprep.subr.mxu0 0.0
    %740 = vmatpush1.msra.mxu0 0.0
    %741 = vmatprep.subr.mxu0 0.0
    %742 = vmatpush1.msra.mxu0 0.0
    %743 = vmatprep.subr.mxu0 0.0
    %744 = vmatpush1.msra.mxu0 0.0
    %745 = vmatprep.subr.mxu0 0.0
    %746 = vmatpush1.msra.mxu0 0.0
    %747 = vmatprep.subr.mxu0 0.0
    %748 = vmatpush1.msra.mxu0 0.0
    %749 = vmatprep.subr.mxu0 0.0
    %750 = vmatpush1.msra.mxu0 0.0
    %751 = vmatprep.subr.mxu0 0.0
    %752 = vmatpush1.msra.mxu0 0.0
    %753 = vmatprep.subr.mxu0 0.0
    %754 = vmatpush1.msra.mxu0 0.0
    %755 = vmatprep.subr.mxu0 0.0
    %756 = vmatpush1.msra.mxu0 0.0
    %757 = vmatprep.subr.mxu0 0.0
    %758 = vmatpush1.msra.mxu0 0.0
    %759 = vmatprep.subr.mxu0 0.0
    %760 = vmatpush1.msra.mxu0 0.0
    %761 = vmatprep.subr.mxu0 0.0
    %762 = vmatpush1.msra.mxu0 0.0
    %763 = vmatprep.subr.mxu0 0.0
    %764 = vmatpush1.msra.mxu0 0.0
    %765 = vmatprep.subr.mxu0 0.0
    %766 = vmatpush1.msra.mxu0 0.0
    %767 = vmatprep.mubr.f32.mxu0 0.0
    %v768 = vand.u32 %v81, 4294901760
    %769 = vmatmul.mubr.f32.gmra.mrb[0].mxu0 %v768
    %v770 = vpop.f32.mrb[0].mxu0
    %v771 = vadd.f32 %v685, %v770
    %v772 = vpop.f32.mrb[0].mxu0
    %773 = vdwg.mxu0
    %774 = vmatprep.subr.mxu0 0.0
    %v775 = vand.u32 %v55, 4294901760
    %v776 = vsub.f32 %v55, %v775
    %777 = vmatpush1.msra.mxu0 %v776
    %778 = vmatprep.subr.mxu0 0.0
    %v779 = vand.u32 %v58, 4294901760
    %v780 = vsub.f32 %v58, %v779
    %781 = vmatpush1.msra.mxu0 %v780
    %782 = vmatprep.subr.mxu0 0.0
    %v783 = vand.u32 %v91, 4294901760
    %v784 = vsub.f32 %v91, %v783
    %785 = vmatpush1.msra.mxu0 %v784
    %786 = vmatprep.subr.mxu0 0.0
    %787 = vmatpush1.msra.mxu0 0.0
    %788 = vmatprep.subr.mxu0 0.0
    %789 = vmatpush1.msra.mxu0 0.0
    %790 = vmatprep.subr.mxu0 0.0
    %791 = vmatpush1.msra.mxu0 0.0
    %792 = vmatprep.subr.mxu0 0.0
    %793 = vmatpush1.msra.mxu0 0.0
    %794 = vmatprep.subr.mxu0 0.0
    %795 = vmatpush1.msra.mxu0 0.0
    %796 = vmatprep.subr.mxu0 0.0
    %797 = vmatpush1.msra.mxu0 0.0
    %798 = vmatprep.subr.mxu0 0.0
    %799 = vmatpush1.msra.mxu0 0.0
    %800 = vmatprep.subr.mxu0 0.0
    %801 = vmatpush1.msra.mxu0 0.0
    %802 = vmatprep.subr.mxu0 0.0
    %803 = vmatpush1.msra.mxu0 0.0
    %804 = vmatprep.subr.mxu0 0.0
    %805 = vmatpush1.msra.mxu0 0.0
    %806 = vmatprep.subr.mxu0 0.0
    %807 = vmatpush1.msra.mxu0 0.0
    %808 = vmatprep.subr.mxu0 0.0
    %809 = vmatpush1.msra.mxu0 0.0
    %810 = vmatprep.subr.mxu0 0.0
    %811 = vmatpush1.msra.mxu0 0.0
    %812 = vmatprep.subr.mxu0 0.0
    %813 = vmatpush1.msra.mxu0 0.0
    %814 = vmatprep.subr.mxu0 0.0
    %815 = vmatpush1.msra.mxu0 0.0
    %816 = vmatprep.subr.mxu0 0.0
    %817 = vmatpush1.msra.mxu0 0.0
    %818 = vmatprep.subr.mxu0 0.0
    %819 = vmatpush1.msra.mxu0 0.0
    %820 = vmatprep.subr.mxu0 0.0
    %821 = vmatpush1.msra.mxu0 0.0
    %822 = vmatprep.subr.mxu0 0.0
    %823 = vmatpush1.msra.mxu0 0.0
    %824 = vmatprep.subr.mxu0 0.0
    %825 = vmatpush1.msra.mxu0 0.0
    %826 = vmatprep.subr.mxu0 0.0
    %827 = vmatpush1.msra.mxu0 0.0
    %828 = vmatprep.subr.mxu0 0.0
    %829 = vmatpush1.msra.mxu0 0.0
    %830 = vmatprep.subr.mxu0 0.0
    %831 = vmatpush1.msra.mxu0 0.0
    %832 = vmatprep.subr.mxu0 0.0
    %833 = vmatpush1.msra.mxu0 0.0
    %834 = vmatprep.subr.mxu0 0.0
    %835 = vmatpush1.msra.mxu0 0.0
    %836 = vmatprep.subr.mxu0 0.0
    %837 = vmatpush1.msra.mxu0 0.0
    %838 = vmatprep.subr.mxu0 0.0
    %839 = vmatpush1.msra.mxu0 0.0
    %840 = vmatprep.subr.mxu0 0.0
    %841 = vmatpush1.msra.mxu0 0.0
    %842 = vmatprep.subr.mxu0 0.0
    %843 = vmatpush1.msra.mxu0 0.0
    %844 = vmatprep.mubr.f32.mxu0 0.0
    %v845 = vand.u32 %v81, 4294901760
    %v846 = vsub.f32 %v81, %v845
    %847 = vmatmul.mubr.f32.gmra.mrb[0].mxu0 %v846
    %v848 = vpop.f32.mrb[0].mxu0
    %v849 = vadd.f32 %v771, %v848
    %v850 = vpop.f32.mrb[0].mxu0
    %851 = vdwg.mxu0
    %852 = vmatprep.subr.mxu0 0.0
    %v853 = vand.u32 %v55, 4294901760
    %854 = vmatpush1.msra.mxu0 %v853
    %855 = vmatprep.subr.mxu0 0.0
    %v856 = vand.u32 %v58, 4294901760
    %857 = vmatpush1.msra.mxu0 %v856
    %858 = vmatprep.subr.mxu0 0.0
    %v859 = vand.u32 %v91, 4294901760
    %860 = vmatpush1.msra.mxu0 %v859
    %861 = vmatprep.subr.mxu0 0.0
    %862 = vmatpush1.msra.mxu0 0.0
    %863 = vmatprep.subr.mxu0 0.0
    %864 = vmatpush1.msra.mxu0 0.0
    %865 = vmatprep.subr.mxu0 0.0
    %866 = vmatpush1.msra.mxu0 0.0
    %867 = vmatprep.subr.mxu0 0.0
    %868 = vmatpush1.msra.mxu0 0.0
    %869 = vmatprep.subr.mxu0 0.0
    %870 = vmatpush1.msra.mxu0 0.0
    %871 = vmatprep.subr.mxu0 0.0
    %872 = vmatpush1.msra.mxu0 0.0
    %873 = vmatprep.subr.mxu0 0.0
    %874 = vmatpush1.msra.mxu0 0.0
    %875 = vmatprep.subr.mxu0 0.0
    %876 = vmatpush1.msra.mxu0 0.0
    %877 = vmatprep.subr.mxu0 0.0
    %878 = vmatpush1.msra.mxu0 0.0
    %879 = vmatprep.subr.mxu0 0.0
    %880 = vmatpush1.msra.mxu0 0.0
    %881 = vmatprep.subr.mxu0 0.0
    %882 = vmatpush1.msra.mxu0 0.0
    %883 = vmatprep.subr.mxu0 0.0
    %884 = vmatpush1.msra.mxu0 0.0
    %885 = vmatprep.subr.mxu0 0.0
    %886 = vmatpush1.msra.mxu0 0.0
    %887 = vmatprep.subr.mxu0 0.0
    %888 = vmatpush1.msra.mxu0 0.0
    %889 = vmatprep.subr.mxu0 0.0
    %890 = vmatpush1.msra.mxu0 0.0
    %891 = vmatprep.subr.mxu0 0.0
    %892 = vmatpush1.msra.mxu0 0.0
    %893 = vmatprep.subr.mxu0 0.0
    %894 = vmatpush1.msra.mxu0 0.0
    %895 = vmatprep.subr.mxu0 0.0
    %896 = vmatpush1.msra.mxu0 0.0
    %897 = vmatprep.subr.mxu0 0.0
    %898 = vmatpush1.msra.mxu0 0.0
    %899 = vmatprep.subr.mxu0 0.0
    %900 = vmatpush1.msra.mxu0 0.0
    %901 = vmatprep.subr.mxu0 0.0
    %902 = vmatpush1.msra.mxu0 0.0
    %903 = vmatprep.subr.mxu0 0.0
    %904 = vmatpush1.msra.mxu0 0.0
    %905 = vmatprep.subr.mxu0 0.0
    %906 = vmatpush1.msra.mxu0 0.0
    %907 = vmatprep.subr.mxu0 0.0
    %908 = vmatpush1.msra.mxu0 0.0
    %909 = vmatprep.subr.mxu0 0.0
    %910 = vmatpush1.msra.mxu0 0.0
    %911 = vmatprep.subr.mxu0 0.0
    %912 = vmatpush1.msra.mxu0 0.0
    %913 = vmatprep.subr.mxu0 0.0
    %914 = vmatpush1.msra.mxu0 0.0
    %915 = vmatprep.subr.mxu0 0.0
    %916 = vmatpush1.msra.mxu0 0.0
    %917 = vmatprep.subr.mxu0 0.0
    %918 = vmatpush1.msra.mxu0 0.0
    %919 = vmatprep.mubr.f32.mxu0 0.0
    %v920 = vand.u32 %v81, 4294901760
    %v921 = vsub.f32 %v81, %v920
    %v922 = vand.u32 %v921, 4294901760
    %923 = vmatmul.mubr.f32.gmra.mrb[0].mxu0 %v922
    %v924 = vpop.f32.mrb[0].mxu0
    %v925 = vadd.f32 %v849, %v924
    %v926 = vpop.f32.mrb[0].mxu0
    %927 = vdwg.mxu0
    %928 = vmatprep.subr.mxu0 0.0
    %v929 = vand.u32 %v55, 4294901760
    %v930 = vsub.f32 %v55, %v929
    %v931 = vand.u32 %v930, 4294901760
    %932 = vmatpush1.msra.mxu0 %v931
    %933 = vmatprep.subr.mxu0 0.0
    %v934 = vand.u32 %v58, 4294901760
    %v935 = vsub.f32 %v58, %v934
    %v936 = vand.u32 %v935, 4294901760
    %937 = vmatpush1.msra.mxu0 %v936
    %938 = vmatprep.subr.mxu0 0.0
    %v939 = vand.u32 %v91, 4294901760
    %v940 = vsub.f32 %v91, %v939
    %v941 = vand.u32 %v940, 4294901760
    %942 = vmatpush1.msra.mxu0 %v941
    %943 = vmatprep.subr.mxu0 0.0
    %944 = vmatpush1.msra.mxu0 0.0
    %945 = vmatprep.subr.mxu0 0.0
    %946 = vmatpush1.msra.mxu0 0.0
    %947 = vmatprep.subr.mxu0 0.0
    %948 = vmatpush1.msra.mxu0 0.0
    %949 = vmatprep.subr.mxu0 0.0
    %950 = vmatpush1.msra.mxu0 0.0
    %951 = vmatprep.subr.mxu0 0.0
    %952 = vmatpush1.msra.mxu0 0.0
    %953 = vmatprep.subr.mxu0 0.0
    %954 = vmatpush1.msra.mxu0 0.0
    %955 = vmatprep.subr.mxu0 0.0
    %956 = vmatpush1.msra.mxu0 0.0
    %957 = vmatprep.subr.mxu0 0.0
    %958 = vmatpush1.msra.mxu0 0.0
    %959 = vmatprep.subr.mxu0 0.0
    %960 = vmatpush1.msra.mxu0 0.0
    %961 = vmatprep.subr.mxu0 0.0
    %962 = vmatpush1.msra.mxu0 0.0
    %963 = vmatprep.subr.mxu0 0.0
    %964 = vmatpush1.msra.mxu0 0.0
    %965 = vmatprep.subr.mxu0 0.0
    %966 = vmatpush1.msra.mxu0 0.0
    %967 = vmatprep.subr.mxu0 0.0
    %968 = vmatpush1.msra.mxu0 0.0
    %969 = vmatprep.subr.mxu0 0.0
    %970 = vmatpush1.msra.mxu0 0.0
    %971 = vmatprep.subr.mxu0 0.0
    %972 = vmatpush1.msra.mxu0 0.0
    %973 = vmatprep.subr.mxu0 0.0
    %974 = vmatpush1.msra.mxu0 0.0
    %975 = vmatprep.subr.mxu0 0.0
    %976 = vmatpush1.msra.mxu0 0.0
    %977 = vmatprep.subr.mxu0 0.0
    %978 = vmatpush1.msra.mxu0 0.0
    %979 = vmatprep.subr.mxu0 0.0
    %980 = vmatpush1.msra.mxu0 0.0
    %981 = vmatprep.subr.mxu0 0.0
    %982 = vmatpush1.msra.mxu0 0.0
    %983 = vmatprep.subr.mxu0 0.0
    %984 = vmatpush1.msra.mxu0 0.0
    %985 = vmatprep.subr.mxu0 0.0
    %986 = vmatpush1.msra.mxu0 0.0
    %987 = vmatprep.subr.mxu0 0.0
    %988 = vmatpush1.msra.mxu0 0.0
    %989 = vmatprep.subr.mxu0 0.0
    %990 = vmatpush1.msra.mxu0 0.0
    %991 = vmatprep.subr.mxu0 0.0
    %992 = vmatpush1.msra.mxu0 0.0
    %993 = vmatprep.subr.mxu0 0.0
    %994 = vmatpush1.msra.mxu0 0.0
    %995 = vmatprep.subr.mxu0 0.0
    %996 = vmatpush1.msra.mxu0 0.0
    %997 = vmatprep.subr.mxu0 0.0
    %998 = vmatpush1.msra.mxu0 0.0
    %999 = vmatprep.subr.mxu0 0.0
    %1000 = vmatpush1.msra.mxu0 0.0
    %1001 = vmatprep.mubr.f32.mxu0 0.0
    %v1002 = vand.u32 %v81, 4294901760
    %1003 = vmatmul.mubr.f32.gmra.mrb[0].mxu0 %v1002
    %v1004 = vpop.f32.mrb[0].mxu0
    %v1005 = vadd.f32 %v925, %v1004
    %v1006 = vpop.f32.mrb[0].mxu0
    %1007 = vdwg.mxu0
    %1008 = vmatprep.subr.mxu0 0.0
    %v1009 = vand.u32 %v55, 4294901760
    %1010 = vmatpush1.msra.mxu0 %v1009
    %1011 = vmatprep.subr.mxu0 0.0
    %v1012 = vand.u32 %v58, 4294901760
    %1013 = vmatpush1.msra.mxu0 %v1012
    %1014 = vmatprep.subr.mxu0 0.0
    %v1015 = vand.u32 %v91, 4294901760
    %1016 = vmatpush1.msra.mxu0 %v1015
    %1017 = vmatprep.subr.mxu0 0.0
    %1018 = vmatpush1.msra.mxu0 0.0
    %1019 = vmatprep.subr.mxu0 0.0
    %1020 = vmatpush1.msra.mxu0 0.0
    %1021 = vmatprep.subr.mxu0 0.0
    %1022 = vmatpush1.msra.mxu0 0.0
    %1023 = vmatprep.subr.mxu0 0.0
    %1024 = vmatpush1.msra.mxu0 0.0
    %1025 = vmatprep.subr.mxu0 0.0
    %1026 = vmatpush1.msra.mxu0 0.0
    %1027 = vmatprep.subr.mxu0 0.0
    %1028 = vmatpush1.msra.mxu0 0.0
    %1029 = vmatprep.subr.mxu0 0.0
    %1030 = vmatpush1.msra.mxu0 0.0
    %1031 = vmatprep.subr.mxu0 0.0
    %1032 = vmatpush1.msra.mxu0 0.0
    %1033 = vmatprep.subr.mxu0 0.0
    %1034 = vmatpush1.msra.mxu0 0.0
    %1035 = vmatprep.subr.mxu0 0.0
    %1036 = vmatpush1.msra.mxu0 0.0
    %1037 = vmatprep.subr.mxu0 0.0
    %1038 = vmatpush1.msra.mxu0 0.0
    %1039 = vmatprep.subr.mxu0 0.0
    %1040 = vmatpush1.msra.mxu0 0.0
    %1041 = vmatprep.subr.mxu0 0.0
    %1042 = vmatpush1.msra.mxu0 0.0
    %1043 = vmatprep.subr.mxu0 0.0
    %1044 = vmatpush1.msra.mxu0 0.0
    %1045 = vmatprep.subr.mxu0 0.0
    %1046 = vmatpush1.msra.mxu0 0.0
    %1047 = vmatprep.subr.mxu0 0.0
    %1048 = vmatpush1.msra.mxu0 0.0
    %1049 = vmatprep.subr.mxu0 0.0
    %1050 = vmatpush1.msra.mxu0 0.0
    %1051 = vmatprep.subr.mxu0 0.0
    %1052 = vmatpush1.msra.mxu0 0.0
    %1053 = vmatprep.subr.mxu0 0.0
    %1054 = vmatpush1.msra.mxu0 0.0
    %1055 = vmatprep.subr.mxu0 0.0
    %1056 = vmatpush1.msra.mxu0 0.0
    %1057 = vmatprep.subr.mxu0 0.0
    %1058 = vmatpush1.msra.mxu0 0.0
    %1059 = vmatprep.subr.mxu0 0.0
    %1060 = vmatpush1.msra.mxu0 0.0
    %1061 = vmatprep.subr.mxu0 0.0
    %1062 = vmatpush1.msra.mxu0 0.0
    %1063 = vmatprep.subr.mxu0 0.0
    %1064 = vmatpush1.msra.mxu0 0.0
    %1065 = vmatprep.subr.mxu0 0.0
    %1066 = vmatpush1.msra.mxu0 0.0
    %1067 = vmatprep.subr.mxu0 0.0
    %1068 = vmatpush1.msra.mxu0 0.0
    %1069 = vmatprep.subr.mxu0 0.0
    %1070 = vmatpush1.msra.mxu0 0.0
    %1071 = vmatprep.subr.mxu0 0.0
    %1072 = vmatpush1.msra.mxu0 0.0
    %1073 = vmatprep.subr.mxu0 0.0
    %1074 = vmatpush1.msra.mxu0 0.0
    %1075 = vmatprep.mubr.f32.mxu0 0.0
    %v1076 = vand.u32 %v81, 4294901760
    %1077 = vmatmul.mubr.f32.gmra.mrb[0].mxu0 %v1076
    %v1078 = vpop.f32.mrb[0].mxu0
    %v1079 = vadd.f32 %v1005, %v1078
    %v1080 = vpop.f32.mrb[0].mxu0
    %1081 = vdwg.mxu0
    %s1082 = scalar_lea.vmem [#allocation7], 1
    %v1083 = vld [vmem:[%s1082] ss:$8 sm:$0x7]
    %v1085 = vlaneseq
    %v1086 = vshrl.u32 %v1085, 7
    %v1087 = vsub.s32 0, %v1086
    %v1088 = vrot.slane %v1083, %v1087
    %v1089 = vlaneseq
    %v1090 = vshrl.u32 %v1089, 7
    %v1091 = vsub.s32 1, %v1090
    %v1092 = vrot.slane %v1083, %v1091
    %v1093 = vlaneseq
    %v1094 = vshrl.u32 %v1093, 7
    %v1095 = vsub.s32 2, %v1094
    %v1096 = vrot.slane %v1083, %v1095
    %v1100 = vmax.f32 %v606, %v1088
    %v1101 = vmax.f32 %v608, %v1092
    %v1102 = vmax.f32 %v1079, %v1096
    %s1103 = scalar_lea.vmem [#allocation7], 2
    %v1104 = vld [vmem:[%s1103] ss:$8 sm:$0x7]
    %v1106 = vlaneseq
    %v1107 = vshrl.u32 %v1106, 7
    %v1108 = vsub.s32 0, %v1107
    %v1109 = vrot.slane %v1104, %v1108
    %v1110 = vlaneseq
    %v1111 = vshrl.u32 %v1110, 7
    %v1112 = vsub.s32 1, %v1111
    %v1113 = vrot.slane %v1104, %v1112
    %v1114 = vlaneseq
    %v1115 = vshrl.u32 %v1114, 7
    %v1116 = vsub.s32 2, %v1115
    %v1117 = vrot.slane %v1104, %v1116
    %v1121 = vmin.f32 %v1100, %v1109
    %v1122 = vmin.f32 %v1101, %v1113
    %v1123 = vmin.f32 %v1102, %v1117
    %s1124 = scalar_lea.vmem [#allocation7], 3
    %v1125 = vld [vmem:[%s1124] ss:$8 sm:$0x7]
    %v1127 = vlaneseq
    %v1128 = vshrl.u32 %v1127, 7
    %v1129 = vsub.s32 0, %v1128
    %v1130 = vrot.slane %v1125, %v1129
    %v1131 = vlaneseq
    %v1132 = vshrl.u32 %v1131, 7
    %v1133 = vsub.s32 1, %v1132
    %v1134 = vrot.slane %v1125, %v1133
    %v1135 = vlaneseq
    %v1136 = vshrl.u32 %v1135, 7
    %v1137 = vsub.s32 2, %v1136
    %v1138 = vrot.slane %v1125, %v1137
    %v1142 = vadd.f32 %v1121, %v1130
    %v1143 = vadd.f32 %v1122, %v1134
    %v1144 = vadd.f32 %v1123, %v1138
    %s1145 = scalar_lea.vmem [#allocation7], 4
    %v1146 = vld [vmem:[%s1145] ss:$8 sm:$0x7]
    %v1148 = vlaneseq
    %v1149 = vshrl.u32 %v1148, 7
    %v1150 = vsub.s32 0, %v1149
    %v1151 = vrot.slane %v1146, %v1150
    %v1152 = vlaneseq
    %v1153 = vshrl.u32 %v1152, 7
    %v1154 = vsub.s32 1, %v1153
    %v1155 = vrot.slane %v1146, %v1154
    %v1156 = vlaneseq
    %v1157 = vshrl.u32 %v1156, 7
    %v1158 = vsub.s32 2, %v1157
    %v1159 = vrot.slane %v1146, %v1158
    %v1163 = vmax.f32 %v1142, %v1151
    %v1164 = vmax.f32 %v1143, %v1155
    %v1165 = vmax.f32 %v1144, %v1159
    %s1166 = scalar_lea.vmem [#allocation7], 5
    %v1167 = vld [vmem:[%s1166] ss:$8 sm:$0x7]
    %v1169 = vlaneseq
    %v1170 = vshrl.u32 %v1169, 7
    %v1171 = vsub.s32 0, %v1170
    %v1172 = vrot.slane %v1167, %v1171
    %v1173 = vlaneseq
    %v1174 = vshrl.u32 %v1173, 7
    %v1175 = vsub.s32 1, %v1174
    %v1176 = vrot.slane %v1167, %v1175
    %v1177 = vlaneseq
    %v1178 = vshrl.u32 %v1177, 7
    %v1179 = vsub.s32 2, %v1178
    %v1180 = vrot.slane %v1167, %v1179
    %v1184 = vmin.f32 %v1163, %v1172
    %v1185 = vmin.f32 %v1164, %v1176
    %v1186 = vmin.f32 %v1165, %v1180
    %1187 = vst [vmem:[#allocation8] sm:$0xff] %v1184
    %1188 = vst [vmem:[#allocation8 + $0x8] sm:$0xff] %v1185
    %vm1189 = vcmask 556032
    %1190 = vst.msk [vmem:[#allocation8 + $0x10] sm:$0xff] %vm1189, %v1186
    // Predicated region
    $region26: #{color_preserving_generator_forward.1} parent=1 // pred_check
      _
    $region27: #{color_preserving_generator_forward.1} parent=1 // pred_check_branch
      %1192 = sbr.rel (0) target = $region29
    $region28: #{color_preserving_generator_forward.1} parent=1 // pred_region
      %s1194 = ssub.s32 384, 384
      %1195 = vsyncadd [#allocation4], %s1194
      %s1197 = sshll.u32 [#allocation8], 4
      %s1198 = int_to_ptr.vmem [resolvable:$true] %s1197
      %1200 = dma.vmem_to_hbm [thread:$0]  %s1198, 384, %s3, [#allocation4]
    $region29: #{color_preserving_generator_forward.1} parent=1 // pred_fallthru
      _
    // Predicated region
    $region30: #{color_preserving_generator_forward.1} parent=1 // pred_check
      _
    $region31: #{color_preserving_generator_forward.1} parent=1 // pred_check_branch
      %1202 = sbr.rel (0) target = $region33
    $region32: #{color_preserving_generator_forward.1} parent=1 // pred_region
      %1203 = dma.done [#allocation4], 384
    $region33: #{color_preserving_generator_forward.1} parent=1 // pred_fallthru
      _
    %1204 = vsyncpa [#allocation3], 1
    %1205 = vsyncpa [#allocation6], 1
    %1206 = vsyncpa [#allocation4], 1

</llo_original>
